<compile_context>
chip_gen: v5e
topology: v5e:2x2
jax: 0.10.0
libtpu: 0.0.40
codegen_flags: <defaults>
</compile_context>

<pallas_src>
import jax
import jax.numpy as jnp
from jax.experimental import pallas as pl
from jax.experimental.pallas import tpu as pltpu


def _aug_lagrangian_kernel(params_ref, out_ref):
    # Single packed SMEM operand: [cost, lam, 0.5*rho].
    c = params_ref[0]
    lam = params_ref[1]
    half_rho = params_ref[2]
    # Horner form: lam*c + 0.5*rho*c*c == c * (lam + half_rho * c)
    out_ref[0] = c * (lam + half_rho * c)


@jax.jit
def augmented_lagrangian_forward(cost, lam, rho):
    """cost, lam, rho: float32 arrays of shape (1,). Returns shape (1,)."""
    # Pack the three scalars into one SMEM vector (one operand DMA descriptor
    # instead of three); the concat and 0.5*rho fold fuse under jit.
    params = jnp.concatenate(
        [
            cost.reshape(1).astype(jnp.float32),
            lam.reshape(1).astype(jnp.float32),
            (0.5 * rho).reshape(1).astype(jnp.float32),
        ]
    )
    return pl.pallas_call(
        _aug_lagrangian_kernel,
        out_shape=jax.ShapeDtypeStruct((1,), jnp.float32),
        in_specs=[pl.BlockSpec(memory_space=pltpu.SMEM)],
        out_specs=pl.BlockSpec(memory_space=pltpu.SMEM),
    )(params)


class AugmentedLagrangianJax:
    """Deterministic parameter setup mirroring the PyTorch __init__.

    lam / rho are kept as device arrays (they change when step() runs), so
    updating them does NOT trigger a recompile of the jitted forward.
    """

    def __init__(self, rho, lam, beta=2.0, thr=1.0):
        self.rho = jnp.full((1,), rho, jnp.float32)
        self.lam = jnp.full((1,), lam, jnp.float32)
        self.beta = jnp.full((1,), beta, jnp.float32)
        self.thr = jnp.full((1,), thr, jnp.float32)

    def forward(self, cost):
        # Keep cost on device: do NOT mirror PyTorch's cost.item() host sync.
        return augmented_lagrangian_forward(
            cost.astype(jnp.float32), self.lam, self.rho
        )


if __name__ == "__main__":
    key = jax.random.PRNGKey(0)
    # cost is a 1-element tensor (the PyTorch module treats it as a scalar).
    cost = jax.random.normal(key, (1,), dtype=jnp.float32)

    module = AugmentedLagrangianJax(rho=0.5, lam=1.5, beta=2.0, thr=1.0)

    out = module.forward(cost)
    out = jax.block_until_ready(out)

    # Reference check in plain JAX (matches PyTorch: lam*c + rho/2*c**2).
    ref = module.lam * cost + module.rho / 2.0 * cost ** 2
    assert out.shape == (1,)
    assert jnp.allclose(out, ref, rtol=1e-6, atol=1e-6)

    print("KERNEL_OK")
</pallas_src>

<mosaic_0001>
module attributes {stable_mosaic.version = 11 : i64} {
  func.func @_aug_lagrangian_kernel(%arg0: memref<3xf32, #tpu.memory_space<smem>>, %arg1: memref<1xf32, #tpu.memory_space<smem>>) attributes {dimension_semantics = [], scalar_prefetch = 0 : i64, scratch_operands = 0 : i64, tpu.core_type = #tpu.core_type<tc>} {
    %c0 = arith.constant 0 : index
    %0 = memref.load %arg0[%c0] : memref<3xf32, #tpu.memory_space<smem>>
    %c1 = arith.constant 1 : index
    %1 = memref.load %arg0[%c1] : memref<3xf32, #tpu.memory_space<smem>>
    %c2 = arith.constant 2 : index
    %2 = memref.load %arg0[%c2] : memref<3xf32, #tpu.memory_space<smem>>
    %3 = arith.mulf %2, %0 : f32
    %4 = arith.addf %1, %3 : f32
    %5 = arith.mulf %0, %4 : f32
    %c0_0 = arith.constant 0 : index
    %6 = memref.load %arg1[%c0_0] : memref<1xf32, #tpu.memory_space<smem>>
    memref.store %5, %arg1[%c0_0] : memref<1xf32, #tpu.memory_space<smem>>
    return
  }
}

</mosaic_0001>

<llo_original>
// kernel: augmented_lagrangian_forward.1
$region0: #{augmented_lagrangian_forward.1}
  #allocation0 [shape = 'u32[]', space=smem, size = 0x4, offset = 0x4, fixed_abs, tag = 'smem constant byte address 0x4 - core index']
  #allocation1 [shape = 'u32[72,128]{1,0:T(1,128)}', space=vmem, size = 0x9000, scoped, tag = 'internal scratch']
  %s0 = inlined_call_operand.vmem [shape: f32[3], index: 0, kind: input, shape index: {}]
  %s1 = inlined_call_operand.hbm [shape: f32[1], index: 1, kind: output, shape index: {}]
  %s2 = sld [smem:[#allocation0]]
  $region18: #{augmented_lagrangian_forward.1} parent=0
    _
  %s4 = ssub.s32 1, %s2
  %s5 = scalar_select 0, %s4, %s2
  $region1: #{augmented_lagrangian_forward.1} parent=0
    #allocation2 [shape = 'u8[512]{0}', space=smem, size = 0x200, scoped, tag = 'input window, operand 0, single buffered']
    #allocation3 [shape = 's32[1]{0}', space=sflag, size = 0x4, scoped, tag = 'scoped memory for augmented_lagrangian_forward.1']
    #allocation4 [shape = 's32[1]{0}', space=sflag, size = 0x4, scoped, tag = 'scoped memory for augmented_lagrangian_forward.1']
    #allocation5 [shape = 'u8[512]{0}', space=smem, size = 0x200, scoped, tag = 'output window, operand 0, single buffered']
    %6 = vsyncpa [#allocation4], 0
    %7 = vsyncpa [#allocation3], 0
    // Predicated region
    $region2: #{augmented_lagrangian_forward.1} parent=1 // pred_check
      _
    $region3: #{augmented_lagrangian_forward.1} parent=1 // pred_check_branch
      %9 = sbr.rel (0) target = $region5
    $region4: #{augmented_lagrangian_forward.1} parent=1 // pred_region
      %11 = vsyncadd [#allocation4], 0
      %s13 = sshll.u32 %s0, 4
      %s14 = int_to_ptr.vmem [resolvable:$true] %s13
      %16 = dma.vmem_to_smem %s14, 16, [#allocation2], [#allocation4]
    $region5: #{augmented_lagrangian_forward.1} parent=1 // pred_fallthru
      _
    // Predicated region
    $region6: #{augmented_lagrangian_forward.1} parent=1 // pred_check
      _
    $region7: #{augmented_lagrangian_forward.1} parent=1 // pred_check_branch
      %18 = sbr.rel (0) target = $region9
    $region8: #{augmented_lagrangian_forward.1} parent=1 // pred_region
      %20 = dma.done [#allocation4], 16
    $region9: #{augmented_lagrangian_forward.1} parent=1 // pred_fallthru
      _
    %21 = sfence
    %s22 = sld [smem:[#allocation2]]
    %s23 = sld [smem:[#allocation2 + $0x1]]
    %s24 = sld [smem:[#allocation2 + $0x2]]
    %s25 = smul.f32 %s24, %s22
    %s26 = sadd.f32 %s23, %s25
    %s27 = smul.f32 %s22, %s26
    %s28 = scalar_lea.smem [#allocation5], 0
    %29 = sst [smem:[%s28]] %s27
    // Predicated region
    $region10: #{augmented_lagrangian_forward.1} parent=1 // pred_check
      _
    $region11: #{augmented_lagrangian_forward.1} parent=1 // pred_check_branch
      %31 = sbr.rel (0) target = $region13
    $region12: #{augmented_lagrangian_forward.1} parent=1 // pred_region
      %33 = vsyncadd [#allocation3], 0
      %s35 = sshll.u32 %s1, 4
      %s36 = int_to_ptr.hbm [resolvable:$true] %s35
      %38 = dma.smem_to_hbm [#allocation5], 16, %s36, [#allocation3]
    $region13: #{augmented_lagrangian_forward.1} parent=1 // pred_fallthru
      _
    // Predicated region
    $region14: #{augmented_lagrangian_forward.1} parent=1 // pred_check
      _
    $region15: #{augmented_lagrangian_forward.1} parent=1 // pred_check_branch
      %40 = sbr.rel (0) target = $region17
    $region16: #{augmented_lagrangian_forward.1} parent=1 // pred_region
      %42 = dma.done [#allocation3], 16
    $region17: #{augmented_lagrangian_forward.1} parent=1 // pred_fallthru
      _
    %43 = sfence
    %44 = vsyncpa [#allocation3], 1
    %45 = vsyncpa [#allocation4], 1

</llo_original>
